<compile_context>
chip_gen: v7x
topology: tpu7x:2x2x1
jax: 0.10.0
libtpu: 0.0.40
codegen_flags: <defaults>
</compile_context>

<pallas_src>
import jax
import jax.numpy as jnp
from jax.experimental import pallas as pl
from jax.experimental.pallas import tpu as pltpu


def rnn1_seq_kernel(
    obs_ref,                 # (B, I)     current timestep's observation block
    h0_ref,                  # (B, HP)    padded initial hidden state (resident)
    w1_ref, b1_ref,          # (I, H), (1, H)          fc1
    wx_ref,                  # (H, 4H)    x-side fused gate weights [r|z|n_x|0]
    wh_ref,                  # (HP, 4H)   h-side fused gate weights [r|z|0|n_h]
    bcat_ref,                # (1, 4H)    fused gate bias
    w2_ref, b2_ref,          # (H, AP), (1, AP)        fc2 (lane-padded)
    q_ref,                   # (B, AP)    current timestep's q output block
    hout_ref,                # (B, HP)    final hidden state output (resident)
    h_scr,                   # (B, HP)    persistent hidden-state scratch
):
    t = pl.program_id(0)
    H = w1_ref.shape[1]

    # Load the initial hidden state into the persistent scratch on step 0.
    @pl.when(t == 0)
    def _():
        h_scr[...] = h0_ref[...]

    # fc1 + ReLU
    x = jnp.maximum(
        jnp.dot(obs_ref[...], w1_ref[...], preferred_element_type=jnp.float32)
        + b1_ref[...],
        0.0,
    )

    # Fused gate pre-activations: two lane-dense MXU matmuls, no lane concat.
    # Padding lanes of h (>= H) hit zero rows of wh_ref, so they contribute 0.
    h_pad = h_scr[...]
    g = (
        jnp.dot(x, wx_ref[...], preferred_element_type=jnp.float32)
        + jnp.dot(h_pad, wh_ref[...], preferred_element_type=jnp.float32)
        + bcat_ref[...]
    )

    # One 64-lane sigmoid push for r and z, one tanh for n.
    rz = jax.nn.sigmoid(g[:, 0 : 2 * H])
    r = rz[:, 0:H]
    z = rz[:, H : 2 * H]
    n = jnp.tanh(g[:, 2 * H : 3 * H] + r * g[:, 3 * H : 4 * H])
    h = h_pad[:, 0:H]
    h_new = (1.0 - z) * n + z * h

    # fc2 -> lane-padded q (128 lanes -> unmasked stores); wrapper slices to A.
    q_ref[...] = (
        jnp.dot(h_new, w2_ref[...], preferred_element_type=jnp.float32)
        + b2_ref[...]
    ).astype(q_ref.dtype)

    # Persist the hidden state; padding lanes stay zero from the initial copy.
    h_scr[:, 0:H] = h_new

    @pl.when(t == pl.num_programs(0) - 1)
    def _():
        hout_ref[...] = h_scr[...]


def fuse_params(p):
    """Concatenate / pad the per-gate PyTorch-style params into kernel-ready arrays.

    Done ONCE (not per call).  Builds the split x-side / h-side fused gate
    weights (no in-kernel lane concat needed) and lane-pads fc2 + the h-side
    weight rows so the recurrent state path is fully lane-dense.
    """
    H = p["w_hr"].shape[0]
    A = p["w2"].shape[1]
    A_pad = ((A + 127) // 128) * 128
    H_pad = ((H + 127) // 128) * 128
    zero = jnp.zeros((H, H), jnp.float32)

    # x-side columns: [ r | z | n_x | 0 ], h-side columns: [ r | z | 0 | n_h ].
    w_x = jnp.concatenate([p["w_ir"], p["w_iz"], p["w_in"], zero], axis=1)   # [H, 4H]
    w_h = jnp.concatenate([p["w_hr"], p["w_hz"], zero, p["w_hn"]], axis=1)   # [H, 4H]
    w_h_pad = jnp.zeros((H_pad, 4 * H), jnp.float32).at[:H, :].set(w_h)      # [HP, 4H]

    b_cat = jnp.concatenate(
        [p["b_ir"] + p["b_hr"], p["b_iz"] + p["b_hz"], p["b_in"], p["b_hn"]],
        axis=1,
    )  # [1, 4H]

    w2_pad = jnp.zeros((H, A_pad), jnp.float32).at[:, :A].set(p["w2"])
    b2_pad = jnp.zeros((1, A_pad), jnp.float32).at[:, :A].set(p["b2"])

    return {
        "w1": p["w1"], "b1": p["b1"],
        "w_x": w_x, "w_h": w_h_pad, "b_cat": b_cat,
        "w2": w2_pad, "b2": b2_pad,
    }


def rnn1_forward_seq(obs_seq, hidden_state, fp, n_actions):
    """Run the GRU over a whole sequence in ONE pallas_call.

    obs_seq: [T, B, input_shape]; hidden_state: [..., H] (reshaped to [B, H]).
    Returns (q: [T, B, n_actions], h_final: [B, H]).
    """
    T, B, I = obs_seq.shape
    H = fp["w1"].shape[1]
    HP = fp["w_h"].shape[0]
    AP = fp["w2"].shape[1]

    h0 = hidden_state.reshape(-1, H).astype(jnp.float32)
    h0_pad = jnp.zeros((B, HP), jnp.float32).at[:, :H].set(h0)

    args = (obs_seq, h0_pad, fp["w1"], fp["b1"], fp["w_x"], fp["w_h"],
            fp["b_cat"], fp["w2"], fp["b2"])

    const = lambda t: (0, 0)  # weights / state: DMA once, stay VMEM-resident
    in_specs = [
        pl.BlockSpec((None, B, I), lambda t: (t, 0, 0)),   # obs streamed along T
        pl.BlockSpec((B, HP), const),                      # h0 (padded)
        pl.BlockSpec((I, H), const),                       # w1
        pl.BlockSpec((1, H), const),                       # b1
        pl.BlockSpec((H, 4 * H), const),                   # w_x
        pl.BlockSpec((HP, 4 * H), const),                  # w_h (row-padded)
        pl.BlockSpec((1, 4 * H), const),                   # b_cat
        pl.BlockSpec((H, AP), const),                      # w2 (lane-padded)
        pl.BlockSpec((1, AP), const),                      # b2 (lane-padded)
    ]
    out_specs = (
        pl.BlockSpec((None, B, AP), lambda t: (t, 0, 0)),  # q streamed along T
        pl.BlockSpec((B, HP), const),                      # final hidden state
    )

    weight_bytes = 4 * sum(int(fp[k].size) for k in
                           ("w1", "b1", "w_x", "w_h", "b_cat", "w2", "b2"))
    flops = 2 * T * B * (I * H + H * 4 * H + HP * 4 * H + H * AP)
    transcendentals = T * B * 3 * H
    bytes_accessed = weight_bytes + 4 * (T * B * (I + AP) + 2 * B * HP)

    q_pad, h_out = pl.pallas_call(
        rnn1_seq_kernel,
        out_shape=(
            jax.ShapeDtypeStruct((T, B, AP), jnp.float32),
            jax.ShapeDtypeStruct((B, HP), jnp.float32),
        ),
        grid_spec=pltpu.PrefetchScalarGridSpec(
            num_scalar_prefetch=0,
            grid=(T,),
            in_specs=in_specs,
            out_specs=out_specs,
            scratch_shapes=[pltpu.VMEM((B, HP), jnp.float32)],
        ),
        compiler_params=pltpu.CompilerParams(
            # Recurrence along T -> must be "arbitrary".
            # TODO(synk): for large agent/env batches on v7x, add a leading
            # "parallel" grid axis over row chunks to use the second TensorCore.
            dimension_semantics=("arbitrary",),
        ),
        cost_estimate=pl.CostEstimate(
            flops=int(flops),
            transcendentals=int(transcendentals),
            bytes_accessed=int(bytes_accessed),
        ),
    )(*args)

    return q_pad[:, :, :n_actions], h_out[:, :H]


def rnn1_forward(obs, hidden_state, fp, n_actions):
    """Single-step forward matching the PyTorch module: obs [B, I], h [..., H]."""
    q_seq, h_new = rnn1_forward_seq(obs[None], hidden_state, fp, n_actions)
    return q_seq[0], h_new


def init_params(key, input_shape, rnn_hidden_dim, n_actions):
    ks = jax.random.split(key, 16)
    H, I, A = rnn_hidden_dim, input_shape, n_actions
    scale = 0.1

    def mat(k, shape):
        return scale * jax.random.normal(k, shape, dtype=jnp.float32)

    return {
        # fc1: [input_shape, H]
        "w1": mat(ks[0], (I, H)), "b1": mat(ks[1], (1, H)),
        # GRU input-to-hidden, per gate [H, H] (GRU input dim == H here)
        "w_ir": mat(ks[2], (H, H)), "w_iz": mat(ks[3], (H, H)), "w_in": mat(ks[4], (H, H)),
        # GRU hidden-to-hidden, per gate [H, H]
        "w_hr": mat(ks[5], (H, H)), "w_hz": mat(ks[6], (H, H)), "w_hn": mat(ks[7], (H, H)),
        "b_ir": mat(ks[8], (1, H)), "b_iz": mat(ks[9], (1, H)), "b_in": mat(ks[10], (1, H)),
        "b_hr": mat(ks[11], (1, H)), "b_hz": mat(ks[12], (1, H)), "b_hn": mat(ks[13], (1, H)),
        # fc2: [H, n_actions]
        "w2": mat(ks[14], (H, A)), "b2": mat(ks[15], (1, A)),
    }


def rnn1_reference(obs, hidden_state, p):
    """Pure-JAX reference mirroring PyTorch RNN1.forward (unfused params)."""
    H = p["w_hr"].shape[0]
    h = hidden_state.reshape(-1, H)
    x = jnp.maximum(obs @ p["w1"] + p["b1"], 0.0)
    r = jax.nn.sigmoid(x @ p["w_ir"] + p["b_ir"] + h @ p["w_hr"] + p["b_hr"])
    z = jax.nn.sigmoid(x @ p["w_iz"] + p["b_iz"] + h @ p["w_hz"] + p["b_hz"])
    n = jnp.tanh(x @ p["w_in"] + p["b_in"] + r * (h @ p["w_hn"] + p["b_hn"]))
    h_new = (1.0 - z) * n + z * h
    q = h_new @ p["w2"] + p["b2"]
    return q, h_new


if __name__ == "__main__":
    B = 8            # batch (e.g. n_agents) -> one full f32 sublane group
    INPUT_SHAPE = 32
    H = 32           # rnn_hidden_dim -> 4H = 128 lanes for the fused gate matmuls
    A = 16           # n_actions
    T = 8            # sequence length (time loop runs inside the kernel grid)

    key = jax.random.PRNGKey(0)
    k_obs, k_h, k_p = jax.random.split(key, 3)

    obs_seq = jax.random.normal(k_obs, (T, B, INPUT_SHAPE), dtype=jnp.float32)
    hidden_state = jax.random.normal(k_h, (B, H), dtype=jnp.float32)
    params = init_params(k_p, INPUT_SHAPE, H, A)
    fused = fuse_params(params)

    # --- single-step check (exactly the module's forward) ---
    q1, h1 = rnn1_forward(obs_seq[0], hidden_state, fused, A)
    q1 = jax.block_until_ready(q1)
    h1 = jax.block_until_ready(h1)
    q1_ref, h1_ref = rnn1_reference(obs_seq[0], hidden_state, params)
    assert jnp.allclose(q1, q1_ref, atol=1e-5, rtol=1e-5)
    assert jnp.allclose(h1, h1_ref, atol=1e-5, rtol=1e-5)

    # --- full-sequence check (time loop inside one pallas_call) ---
    q_seq, h_T = rnn1_forward_seq(obs_seq, hidden_state, fused, A)
    q_seq = jax.block_until_ready(q_seq)
    h_T = jax.block_until_ready(h_T)

    h_ref = hidden_state
    for t in range(T):
        q_t_ref, h_ref = rnn1_reference(obs_seq[t], h_ref, params)
        assert jnp.allclose(q_seq[t], q_t_ref, atol=1e-5, rtol=1e-5)
    assert jnp.allclose(h_T, h_ref, atol=1e-5, rtol=1e-5)

    print("KERNEL_OK")
</pallas_src>

<mosaic_0001>
module attributes {stable_mosaic.version = 11 : i64} {
  func.func @rnn1_seq_kernel(%arg0: i32, %arg1: memref<1x8x32xf32, #tpu.memory_space<vmem>>, %arg2: memref<8x128xf32, #tpu.memory_space<vmem>>, %arg3: memref<32x32xf32, #tpu.memory_space<vmem>>, %arg4: memref<1x32xf32, #tpu.memory_space<vmem>>, %arg5: memref<32x128xf32, #tpu.memory_space<vmem>>, %arg6: memref<128x128xf32, #tpu.memory_space<vmem>>, %arg7: memref<1x128xf32, #tpu.memory_space<vmem>>, %arg8: memref<32x128xf32, #tpu.memory_space<vmem>>, %arg9: memref<1x128xf32, #tpu.memory_space<vmem>>, %arg10: memref<1x8x128xf32, #tpu.memory_space<vmem>>, %arg11: memref<8x128xf32, #tpu.memory_space<vmem>>, %arg12: memref<8x128xf32, #tpu.memory_space<vmem>>) attributes {dimension_semantics = [#tpu.dimension_semantics<arbitrary>], iteration_bounds = array<i64: 1>, scalar_prefetch = 0 : i64, scratch_operands = 1 : i64, tpu.core_type = #tpu.core_type<tc>, window_params = [{transform_indices = @transform_0, window_bounds = array<i64: 1, 8, 32>}, {pipeline_mode = #tpu.pipeline_mode<synchronous>, transform_indices = @transform_1, window_bounds = array<i64: 8, 128>}, {pipeline_mode = #tpu.pipeline_mode<synchronous>, transform_indices = @transform_2, window_bounds = array<i64: 32, 32>}, {pipeline_mode = #tpu.pipeline_mode<synchronous>, transform_indices = @transform_3, window_bounds = array<i64: 1, 32>}, {pipeline_mode = #tpu.pipeline_mode<synchronous>, transform_indices = @transform_4, window_bounds = array<i64: 32, 128>}, {pipeline_mode = #tpu.pipeline_mode<synchronous>, transform_indices = @transform_5, window_bounds = array<i64: 128, 128>}, {pipeline_mode = #tpu.pipeline_mode<synchronous>, transform_indices = @transform_6, window_bounds = array<i64: 1, 128>}, {pipeline_mode = #tpu.pipeline_mode<synchronous>, transform_indices = @transform_7, window_bounds = array<i64: 32, 128>}, {pipeline_mode = #tpu.pipeline_mode<synchronous>, transform_indices = @transform_8, window_bounds = array<i64: 1, 128>}, {transform_indices = @transform_9, window_bounds = array<i64: 1, 8, 128>}, {pipeline_mode = #tpu.pipeline_mode<synchronous>, transform_indices = @transform_10, window_bounds = array<i64: 8, 128>}]} {
    %c0_i32 = arith.constant 0 : i32
    %0 = arith.cmpi eq, %arg0, %c0_i32 : i32
    %1 = arith.extui %0 : i1 to i32
    %c0_i32_0 = arith.constant 0 : i32
    %2 = arith.cmpi ne, %1, %c0_i32_0 : i32
    scf.if %2 {
      %c0_32 = arith.constant 0 : index
      %c0_33 = arith.constant 0 : index
      %52 = vector.load %arg2[%c0_32, %c0_33] : memref<8x128xf32, #tpu.memory_space<vmem>>, vector<8x128xf32>
      %c0_34 = arith.constant 0 : index
      %c0_35 = arith.constant 0 : index
      %53 = vector.load %arg12[%c0_34, %c0_35] : memref<8x128xf32, #tpu.memory_space<vmem>>, vector<8x128xf32>
      tpu.vector_store %arg12[%c0_34, %c0_35], %52 {strides = array<i32>} : memref<8x128xf32, #tpu.memory_space<vmem>>, vector<8x128xf32>,
    } else {
    }
    %c0 = arith.constant 0 : index
    %c0_1 = arith.constant 0 : index
    %c0_2 = arith.constant 0 : index
    %3 = vector.load %arg1[%c0, %c0_1, %c0_2] : memref<1x8x32xf32, #tpu.memory_space<vmem>>, vector<1x8x32xf32>
    %4 = vector.shape_cast %3 : vector<1x8x32xf32> to vector<8x32xf32>
    %c0_3 = arith.constant 0 : index
    %c0_4 = arith.constant 0 : index
    %5 = vector.load %arg3[%c0_3, %c0_4] : memref<32x32xf32, #tpu.memory_space<vmem>>, vector<32x32xf32>
    %cst = arith.constant dense<0.000000e+00> : vector<8x32xf32>
    %6 = tpu.matmul %4, %5, %cst {dimension_numbers = #tpu.dot_dimension_numbers<[1], [0], [0], [1], [0, 0, 1, 1], [], []>} : vector<8x32xf32>, vector<32x32xf32>, vector<8x32xf32> -> vector<8x32xf32>
    %c0_5 = arith.constant 0 : index
    %c0_6 = arith.constant 0 : index
    %7 = vector.load %arg4[%c0_5, %c0_6] : memref<1x32xf32, #tpu.memory_space<vmem>>, vector<1x32xf32>
    %8 = vector.broadcast %7 : vector<1x32xf32> to vector<8x32xf32>
    %9 = arith.addf %6, %8 : vector<8x32xf32>
    %cst_7 = arith.constant 0.000000e+00 : f32
    %10 = vector.broadcast %cst_7 : f32 to vector<8x32xf32>
    %11 = arith.maximumf %9, %10 : vector<8x32xf32>
    %c0_8 = arith.constant 0 : index
    %c0_9 = arith.constant 0 : index
    %12 = vector.load %arg12[%c0_8, %c0_9] : memref<8x128xf32, #tpu.memory_space<vmem>>, vector<8x128xf32>
    %c0_10 = arith.constant 0 : index
    %c0_11 = arith.constant 0 : index
    %13 = vector.load %arg5[%c0_10, %c0_11] : memref<32x128xf32, #tpu.memory_space<vmem>>, vector<32x128xf32>
    %cst_12 = arith.constant dense<0.000000e+00> : vector<8x128xf32>
    %14 = tpu.matmul %11, %13, %cst_12 {dimension_numbers = #tpu.dot_dimension_numbers<[1], [0], [0], [1], [0, 0, 1, 1], [], []>} : vector<8x32xf32>, vector<32x128xf32>, vector<8x128xf32> -> vector<8x128xf32>
    %c0_13 = arith.constant 0 : index
    %c0_14 = arith.constant 0 : index
    %15 = vector.load %arg6[%c0_13, %c0_14] : memref<128x128xf32, #tpu.memory_space<vmem>>, vector<128x128xf32>
    %cst_15 = arith.constant dense<0.000000e+00> : vector<8x128xf32>
    %16 = tpu.matmul %12, %15, %cst_15 {dimension_numbers = #tpu.dot_dimension_numbers<[1], [0], [0], [1], [0, 0, 1, 1], [], []>} : vector<8x128xf32>, vector<128x128xf32>, vector<8x128xf32> -> vector<8x128xf32>
    %17 = arith.addf %14, %16 : vector<8x128xf32>
    %c0_16 = arith.constant 0 : index
    %c0_17 = arith.constant 0 : index
    %18 = vector.load %arg7[%c0_16, %c0_17] : memref<1x128xf32, #tpu.memory_space<vmem>>, vector<1x128xf32>
    %19 = vector.broadcast %18 : vector<1x128xf32> to vector<8x128xf32>
    %20 = arith.addf %17, %19 : vector<8x128xf32>
    %21 = vector.extract_strided_slice %20 {offsets = [0, 0], sizes = [8, 64], strides = [1, 1]} : vector<8x128xf32> to vector<8x64xf32>
    %22 = arith.negf %21 : vector<8x64xf32>
    %23 = math.exp %22 : vector<8x64xf32>
    %cst_18 = arith.constant 1.000000e+00 : f32
    %24 = vector.broadcast %cst_18 : f32 to vector<8x64xf32>
    %25 = arith.addf %24, %23 : vector<8x64xf32>
    %26 = arith.divf %24, %25 : vector<8x64xf32>
    %27 = vector.extract_strided_slice %26 {offsets = [0, 0], sizes = [8, 32], strides = [1, 1]} : vector<8x64xf32> to vector<8x32xf32>
    %28 = vector.extract_strided_slice %26 {offsets = [0, 32], sizes = [8, 32], strides = [1, 1]} : vector<8x64xf32> to vector<8x32xf32>
    %29 = vector.extract_strided_slice %20 {offsets = [0, 64], sizes = [8, 32], strides = [1, 1]} : vector<8x128xf32> to vector<8x32xf32>
    %30 = vector.extract_strided_slice %20 {offsets = [0, 96], sizes = [8, 32], strides = [1, 1]} : vector<8x128xf32> to vector<8x32xf32>
    %31 = arith.mulf %27, %30 : vector<8x32xf32>
    %32 = arith.addf %29, %31 : vector<8x32xf32>
    %33 = math.tanh %32 : vector<8x32xf32>
    %34 = vector.extract_strided_slice %12 {offsets = [0, 0], sizes = [8, 32], strides = [1, 1]} : vector<8x128xf32> to vector<8x32xf32>
    %cst_19 = arith.constant 1.000000e+00 : f32
    %35 = vector.broadcast %cst_19 : f32 to vector<8x32xf32>
    %36 = arith.subf %35, %28 : vector<8x32xf32>
    %37 = arith.mulf %36, %33 : vector<8x32xf32>
    %38 = arith.mulf %28, %34 : vector<8x32xf32>
    %39 = arith.addf %37, %38 : vector<8x32xf32>
    %c0_20 = arith.constant 0 : index
    %c0_21 = arith.constant 0 : index
    %40 = vector.load %arg8[%c0_20, %c0_21] : memref<32x128xf32, #tpu.memory_space<vmem>>, vector<32x128xf32>
    %cst_22 = arith.constant dense<0.000000e+00> : vector<8x128xf32>
    %41 = tpu.matmul %39, %40, %cst_22 {dimension_numbers = #tpu.dot_dimension_numbers<[1], [0], [0], [1], [0, 0, 1, 1], [], []>} : vector<8x32xf32>, vector<32x128xf32>, vector<8x128xf32> -> vector<8x128xf32>
    %c0_23 = arith.constant 0 : index
    %c0_24 = arith.constant 0 : index
    %42 = vector.load %arg9[%c0_23, %c0_24] : memref<1x128xf32, #tpu.memory_space<vmem>>, vector<1x128xf32>
    %43 = vector.broadcast %42 : vector<1x128xf32> to vector<8x128xf32>
    %44 = arith.addf %41, %43 : vector<8x128xf32>
    %c0_25 = arith.constant 0 : index
    %c0_26 = arith.constant 0 : index
    %c0_27 = arith.constant 0 : index
    %45 = vector.load %arg10[%c0_25, %c0_26, %c0_27] : memref<1x8x128xf32, #tpu.memory_space<vmem>>, vector<1x8x128xf32>
    %46 = vector.shape_cast %45 : vector<1x8x128xf32> to vector<8x128xf32>
    %47 = vector.shape_cast %44 : vector<8x128xf32> to vector<1x8x128xf32>
    tpu.vector_store %arg10[%c0_25, %c0_26, %c0_27], %47 {strides = array<i32>} : memref<1x8x128xf32, #tpu.memory_space<vmem>>, vector<1x8x128xf32>,
    %c0_28 = arith.constant 0 : index
    %c0_29 = arith.constant 0 : index
    %48 = vector.load %arg12[%c0_28, %c0_29] : memref<8x128xf32, #tpu.memory_space<vmem>>, vector<8x32xf32>
    tpu.vector_store %arg12[%c0_28, %c0_29], %39 {strides = array<i32>} : memref<8x128xf32, #tpu.memory_space<vmem>>, vector<8x32xf32>,
    %c0_i32_30 = arith.constant 0 : i32
    %49 = arith.cmpi eq, %arg0, %c0_i32_30 : i32
    %50 = arith.extui %49 : i1 to i32
    %c0_i32_31 = arith.constant 0 : i32
    %51 = arith.cmpi ne, %50, %c0_i32_31 : i32
    scf.if %51 {
      %c0_32 = arith.constant 0 : index
      %c0_33 = arith.constant 0 : index
      %52 = vector.load %arg12[%c0_32, %c0_33] : memref<8x128xf32, #tpu.memory_space<vmem>>, vector<8x128xf32>
      %c0_34 = arith.constant 0 : index
      %c0_35 = arith.constant 0 : index
      %53 = vector.load %arg11[%c0_34, %c0_35] : memref<8x128xf32, #tpu.memory_space<vmem>>, vector<8x128xf32>
      tpu.vector_store %arg11[%c0_34, %c0_35], %52 {strides = array<i32>} : memref<8x128xf32, #tpu.memory_space<vmem>>, vector<8x128xf32>,
    } else {
    }
    return
  }
  func.func @transform_0(%arg0: i32) -> (i32, i32, i32) {
    %c0_i32 = arith.constant 0 : i32
    %c0_i32_0 = arith.constant 0 : i32
    %c0_i32_1 = arith.constant 0 : i32
    return %arg0, %c0_i32, %c0_i32_0 : i32, i32, i32
  }
  func.func @transform_1(%arg0: i32) -> (i32, i32) {
    %c0_i32 = arith.constant 0 : i32
    %c0_i32_0 = arith.constant 0 : i32
    %c0_i32_1 = arith.constant 0 : i32
    return %c0_i32, %c0_i32_0 : i32, i32
  }
  func.func @transform_2(%arg0: i32) -> (i32, i32) {
    %c0_i32 = arith.constant 0 : i32
    %c0_i32_0 = arith.constant 0 : i32
    %c0_i32_1 = arith.constant 0 : i32
    return %c0_i32, %c0_i32_0 : i32, i32
  }
  func.func @transform_3(%arg0: i32) -> (i32, i32) {
    %c0_i32 = arith.constant 0 : i32
    %c0_i32_0 = arith.constant 0 : i32
    %c0_i32_1 = arith.constant 0 : i32
    return %c0_i32, %c0_i32_0 : i32, i32
  }
  func.func @transform_4(%arg0: i32) -> (i32, i32) {
    %c0_i32 = arith.constant 0 : i32
    %c0_i32_0 = arith.constant 0 : i32
    %c0_i32_1 = arith.constant 0 : i32
    return %c0_i32, %c0_i32_0 : i32, i32
  }
  func.func @transform_5(%arg0: i32) -> (i32, i32) {
    %c0_i32 = arith.constant 0 : i32
    %c0_i32_0 = arith.constant 0 : i32
    %c0_i32_1 = arith.constant 0 : i32
    return %c0_i32, %c0_i32_0 : i32, i32
  }
  func.func @transform_6(%arg0: i32) -> (i32, i32) {
    %c0_i32 = arith.constant 0 : i32
    %c0_i32_0 = arith.constant 0 : i32
    %c0_i32_1 = arith.constant 0 : i32
    return %c0_i32, %c0_i32_0 : i32, i32
  }
  func.func @transform_7(%arg0: i32) -> (i32, i32) {
    %c0_i32 = arith.constant 0 : i32
    %c0_i32_0 = arith.constant 0 : i32
    %c0_i32_1 = arith.constant 0 : i32
    return %c0_i32, %c0_i32_0 : i32, i32
  }
  func.func @transform_8(%arg0: i32) -> (i32, i32) {
    %c0_i32 = arith.constant 0 : i32
    %c0_i32_0 = arith.constant 0 : i32
    %c0_i32_1 = arith.constant 0 : i32
    return %c0_i32, %c0_i32_0 : i32, i32
  }
  func.func @transform_9(%arg0: i32) -> (i32, i32, i32) {
    %c0_i32 = arith.constant 0 : i32
    %c0_i32_0 = arith.constant 0 : i32
    %c0_i32_1 = arith.constant 0 : i32
    return %arg0, %c0_i32, %c0_i32_0 : i32, i32, i32
  }
  func.func @transform_10(%arg0: i32) -> (i32, i32) {
    %c0_i32 = arith.constant 0 : i32
    %c0_i32_0 = arith.constant 0 : i32
    %c0_i32_1 = arith.constant 0 : i32
    return %c0_i32, %c0_i32_0 : i32, i32
  }
}

</mosaic_0001>

<llo_original>
// kernel: tpu_custom_call.1
$region0: #{tpu_custom_call.1}
  #allocation0 [shape = 'u32[]', space=smem, size = 0x4, offset = 0x4, fixed_abs, tag = 'smem constant byte address 0x4 - core index']
  #allocation1 [shape = 'u32[144,128]{1,0:T(1,128)}', space=vmem, size = 0x12000, scoped, tag = 'internal scratch']
  #allocation2 [shape = 'f32[8,128]{1,0:T(8,128)}', space=vmem, size = 0x1000, scoped, tag = 'scratch operand']
  %s0 = inlined_call_operand.hbm [shape: f32[1,8,32], index: 0, kind: input, shape index: {}]
  %s1 = inlined_call_operand.hbm [shape: f32[8,128], index: 1, kind: input, shape index: {}]
  %s2 = inlined_call_operand.hbm [shape: f32[32,32], index: 2, kind: input, shape index: {}]
  %s3 = inlined_call_operand.vmem [shape: f32[1,32], index: 3, kind: input, shape index: {}]
  %s4 = inlined_call_operand.hbm [shape: f32[32,128], index: 4, kind: input, shape index: {}]
  %s5 = inlined_call_operand.hbm [shape: f32[128,128], index: 5, kind: input, shape index: {}]
  %s6 = inlined_call_operand.vmem [shape: f32[1,128], index: 6, kind: input, shape index: {}]
  %s7 = inlined_call_operand.hbm [shape: f32[32,128], index: 7, kind: input, shape index: {}]
  %s8 = inlined_call_operand.vmem [shape: f32[1,128], index: 8, kind: input, shape index: {}]
  %s9 = inlined_call_operand.hbm [shape: f32[1,8,128], index: 9, kind: output, shape index: {0}]
  %s10 = inlined_call_operand.hbm [shape: f32[8,128], index: 10, kind: output, shape index: {1}]
  %11 = xla_tuple %s9, %s10
  %s12 = sld [smem:[#allocation0]]
  $region86: #{tpu_custom_call.1} parent=0
    _
  %s14 = ssub.s32 1, %s12
  %s15 = scalar_select 0, %s14, %s12
  $region1: #{tpu_custom_call.1} parent=0
    #allocation3 [shape = 'u8[4096]{0}', space=vmem, size = 0x1000, scoped, tag = 'input window, operand 0, single buffered']
    #allocation4 [shape = 's32[1]{0}', space=sflag, size = 0x4, scoped, tag = 'scoped memory for tpu_custom_call.1']
    #allocation5 [shape = 's32[1]{0}', space=sflag, size = 0x4, scoped, tag = 'scoped memory for tpu_custom_call.1']
    #allocation6 [shape = 'u8[4096]{0}', space=vmem, size = 0x1000, scoped, tag = 'input window, operand 1, single buffered']
    #allocation7 [shape = 's32[1]{0}', space=sflag, size = 0x4, scoped, tag = 'scoped memory for tpu_custom_call.1']
    #allocation8 [shape = 'u8[16384]{0}', space=vmem, size = 0x4000, scoped, tag = 'input window, operand 2, single buffered']
    #allocation9 [shape = 'u8[16384]{0}', space=vmem, size = 0x4000, scoped, tag = 'input window, operand 4, single buffered']
    #allocation10 [shape = 's32[1]{0}', space=sflag, size = 0x4, scoped, tag = 'scoped memory for tpu_custom_call.1']
    #allocation11 [shape = 'u8[65536]{0}', space=vmem, size = 0x10000, scoped, tag = 'input window, operand 5, single buffered']
    #allocation12 [shape = 'u8[16384]{0}', space=vmem, size = 0x4000, scoped, tag = 'input window, operand 7, single buffered']
    #allocation13 [shape = 's32[1]{0}', space=sflag, size = 0x4, scoped, tag = 'scoped memory for tpu_custom_call.1']
    #allocation14 [shape = 'u8[4096]{0}', space=vmem, size = 0x1000, scoped, tag = 'output window, operand 0, single buffered']
    #allocation15 [shape = 'u8[4096]{0}', space=vmem, size = 0x1000, scoped, tag = 'output window, operand 1, single buffered']
    #allocation16 [shape = 's32[1]{0}', space=sflag, size = 0x4, scoped, tag = 'scoped memory for tpu_custom_call.1']
    %16 = vsyncpa [#allocation4], 0
    %17 = vsyncpa [#allocation7], 0
    %18 = vsyncpa [#allocation10], 0
    %19 = vsyncpa [#allocation13], 0
    %20 = vsyncpa [#allocation5], 0
    %21 = vsyncpa [#allocation16], 0
    // Predicated region
    $region2: #{tpu_custom_call.1} parent=1 // pred_check
      _
    $region3: #{tpu_custom_call.1} parent=1 // pred_check_branch
      %23 = sbr.rel (0) target = $region5
    $region4: #{tpu_custom_call.1} parent=1 // pred_region
      %s25 = ssub.s32 128, 128
      %26 = vsyncadd [#allocation4], %s25
      %s28 = sshll.u32 [#allocation3], 4
      %s29 = int_to_ptr.vmem [resolvable:$true] %s28
      %31 = dma.hbm_to_vmem [thread:$0]  %s0, 128, %s29, [#allocation4]
    $region5: #{tpu_custom_call.1} parent=1 // pred_fallthru
      _
    // Predicated region
    $region6: #{tpu_custom_call.1} parent=1 // pred_check
      _
    $region7: #{tpu_custom_call.1} parent=1 // pred_check_branch
      %33 = sbr.rel (0) target = $region9
    $region8: #{tpu_custom_call.1} parent=1 // pred_region
      %s35 = ssub.s32 128, 128
      %36 = vsyncadd [#allocation7], %s35
      %s38 = sshll.u32 [#allocation6], 4
      %s39 = int_to_ptr.vmem [resolvable:$true] %s38
      %41 = dma.hbm_to_vmem [thread:$0]  %s1, 128, %s39, [#allocation7]
    $region9: #{tpu_custom_call.1} parent=1 // pred_fallthru
      _
    // Predicated region
    $region10: #{tpu_custom_call.1} parent=1 // pred_check
      _
    $region11: #{tpu_custom_call.1} parent=1 // pred_check_branch
      %43 = sbr.rel (0) target = $region13
    $region12: #{tpu_custom_call.1} parent=1 // pred_region
      %s45 = ssub.s32 512, 512
      %46 = vsyncadd [#allocation7], %s45
      %s47 = sshll.u32 [#allocation8], 4
      %s48 = int_to_ptr.vmem [resolvable:$true] %s47
      %53 = dma.hbm_to_vmem [thread:$0]  %s2, 512, %s48, [#allocation7], 128, 128, 8
    $region13: #{tpu_custom_call.1} parent=1 // pred_fallthru
      _
    // Predicated region
    $region14: #{tpu_custom_call.1} parent=1 // pred_check
      _
    $region15: #{tpu_custom_call.1} parent=1 // pred_check_branch
      %55 = sbr.rel (0) target = $region17
    $region16: #{tpu_custom_call.1} parent=1 // pred_region
      _
    $region17: #{tpu_custom_call.1} parent=1 // pred_fallthru
      _
    // Predicated region
    $region18: #{tpu_custom_call.1} parent=1 // pred_check
      _
    $region19: #{tpu_custom_call.1} parent=1 // pred_check_branch
      %57 = sbr.rel (0) target = $region21
    $region20: #{tpu_custom_call.1} parent=1 // pred_region
      %s59 = ssub.s32 512, 512
      %60 = vsyncadd [#allocation10], %s59
      %s61 = sshll.u32 [#allocation9], 4
      %s62 = int_to_ptr.vmem [resolvable:$true] %s61
      %67 = dma.hbm_to_vmem [thread:$0]  %s4, 512, %s62, [#allocation10], 128, 128, 8
    $region21: #{tpu_custom_call.1} parent=1 // pred_fallthru
      _
    // Predicated region
    $region22: #{tpu_custom_call.1} parent=1 // pred_check
      _
    $region23: #{tpu_custom_call.1} parent=1 // pred_check_branch
      %69 = sbr.rel (0) target = $region25
    $region24: #{tpu_custom_call.1} parent=1 // pred_region
      %s71 = ssub.s32 2048, 2048
      %72 = vsyncadd [#allocation10], %s71
      %s73 = sshll.u32 [#allocation11], 4
      %s74 = int_to_ptr.vmem [resolvable:$true] %s73
      %79 = dma.hbm_to_vmem [thread:$0]  %s5, 2048, %s74, [#allocation10], 128, 128, 8
    $region25: #{tpu_custom_call.1} parent=1 // pred_fallthru
      _
    // Predicated region
    $region26: #{tpu_custom_call.1} parent=1 // pred_check
      _
    $region27: #{tpu_custom_call.1} parent=1 // pred_check_branch
      %81 = sbr.rel (0) target = $region29
    $region28: #{tpu_custom_call.1} parent=1 // pred_region
      _
    $region29: #{tpu_custom_call.1} parent=1 // pred_fallthru
      _
    // Predicated region
    $region30: #{tpu_custom_call.1} parent=1 // pred_check
      _
    $region31: #{tpu_custom_call.1} parent=1 // pred_check_branch
      %83 = sbr.rel (0) target = $region33
    $region32: #{tpu_custom_call.1} parent=1 // pred_region
      %s85 = ssub.s32 512, 512
      %86 = vsyncadd [#allocation13], %s85
      %s87 = sshll.u32 [#allocation12], 4
      %s88 = int_to_ptr.vmem [resolvable:$true] %s87
      %93 = dma.hbm_to_vmem [thread:$0]  %s7, 512, %s88, [#allocation13], 128, 128, 8
    $region33: #{tpu_custom_call.1} parent=1 // pred_fallthru
      _
    // Predicated region
    $region34: #{tpu_custom_call.1} parent=1 // pred_check
      _
    $region35: #{tpu_custom_call.1} parent=1 // pred_check_branch
      %95 = sbr.rel (0) target = $region37
    $region36: #{tpu_custom_call.1} parent=1 // pred_region
      _
    $region37: #{tpu_custom_call.1} parent=1 // pred_fallthru
      _
    // Predicated region
    $region38: #{tpu_custom_call.1} parent=1 // pred_check
      _
    $region39: #{tpu_custom_call.1} parent=1 // pred_check_branch
      %97 = sbr.rel (0) target = $region41
    $region40: #{tpu_custom_call.1} parent=1 // pred_region
      %98 = dma.done [#allocation4], 128
    $region41: #{tpu_custom_call.1} parent=1 // pred_fallthru
      _
    // Predicated region
    $region42: #{tpu_custom_call.1} parent=1 // pred_check
      _
    $region43: #{tpu_custom_call.1} parent=1 // pred_check_branch
      %100 = sbr.rel (0) target = $region45
    $region44: #{tpu_custom_call.1} parent=1 // pred_region
      %101 = dma.done [#allocation7], 128
    $region45: #{tpu_custom_call.1} parent=1 // pred_fallthru
      _
    // Predicated region
    $region46: #{tpu_custom_call.1} parent=1 // pred_check
      _
    $region47: #{tpu_custom_call.1} parent=1 // pred_check_branch
      %103 = sbr.rel (0) target = $region49
    $region48: #{tpu_custom_call.1} parent=1 // pred_region
      %104 = dma.done [#allocation7], 512
    $region49: #{tpu_custom_call.1} parent=1 // pred_fallthru
      _
    // Predicated region
    $region50: #{tpu_custom_call.1} parent=1 // pred_check
      _
    $region51: #{tpu_custom_call.1} parent=1 // pred_check_branch
      %106 = sbr.rel (0) target = $region53
    $region52: #{tpu_custom_call.1} parent=1 // pred_region
      %107 = dma.done [#allocation10], 512
    $region53: #{tpu_custom_call.1} parent=1 // pred_fallthru
      _
    // Predicated region
    $region54: #{tpu_custom_call.1} parent=1 // pred_check
      _
    $region55: #{tpu_custom_call.1} parent=1 // pred_check_branch
      %109 = sbr.rel (0) target = $region57
    $region56: #{tpu_custom_call.1} parent=1 // pred_region
      %110 = dma.done [#allocation10], 2048
    $region57: #{tpu_custom_call.1} parent=1 // pred_fallthru
      _
    // Predicated region
    $region58: #{tpu_custom_call.1} parent=1 // pred_check
      _
    $region59: #{tpu_custom_call.1} parent=1 // pred_check_branch
      %112 = sbr.rel (0) target = $region61
    $region60: #{tpu_custom_call.1} parent=1 // pred_region
      %113 = dma.done [#allocation13], 512
    $region61: #{tpu_custom_call.1} parent=1 // pred_fallthru
      _
    %p114 = scmp.eq.s32.totalorder 0, 0
    // Predicated region
    $region62: #{tpu_custom_call.1} parent=1 // pred_check
      %p115 = pneg %p114
    $region63: #{tpu_custom_call.1} parent=1 // pred_check_branch
      %117 = sbr.rel (%p115) target = $region65
    $region64: #{tpu_custom_call.1} parent=1 // pred_region
      %v118 = vld [vmem:[#allocation6] sm:$0xff]
      %119 = vst [vmem:[#allocation2] sm:$0xff] %v118
    $region65: #{tpu_custom_call.1} parent=1 // pred_fallthru
      _
    %v120 = vld [vmem:[#allocation3] sm:$0xff]
    %v121 = vld [vmem:[#allocation8] sm:$0xff]
    %v122 = vld [vmem:[#allocation8 + $0x8] sm:$0xff]
    %v123 = vld [vmem:[#allocation8 + $0x10] sm:$0xff]
    %v124 = vld [vmem:[#allocation8 + $0x18] sm:$0xff]
    %v125 = vld [vmem:[%s3] sm:$0x1]
    %v127 = vlaneseq
    %v128 = vshrl.u32 %v127, 7
    %v129 = vsub.s32 0, %v128
    %v130 = vrot.slane %v125, %v129
    %vm132 = vcmask 261120
    %v134 = vsel %vm132, %v120, 0
    %136 = vmatprep.subr.mxu0 0.0
    %137 = vmatpush1.msra.mxu0 %v121
    %138 = vmatprep.subr.mxu0 0.0
    %139 = vmatpush1.msra.mxu0 %v122
    %140 = vmatprep.subr.mxu0 0.0
    %141 = vmatpush1.msra.mxu0 %v123
    %142 = vmatprep.subr.mxu0 0.0
    %143 = vmatpush1.msra.mxu0 %v124
    %144 = vmatprep.subr.mxu0 0.0
    %145 = vmatpush1.msra.mxu0 0.0
    %146 = vmatprep.subr.mxu0 0.0
    %147 = vmatpush1.msra.mxu0 0.0
    %148 = vmatprep.subr.mxu0 0.0
    %149 = vmatpush1.msra.mxu0 0.0
    %150 = vmatprep.subr.mxu0 0.0
    %151 = vmatpush1.msra.mxu0 0.0
    %152 = vmatprep.subr.mxu0 0.0
    %153 = vmatpush1.msra.mxu0 0.0
    %154 = vmatprep.subr.mxu0 0.0
    %155 = vmatpush1.msra.mxu0 0.0
    %156 = vmatprep.subr.mxu0 0.0
    %157 = vmatpush1.msra.mxu0 0.0
    %158 = vmatprep.subr.mxu0 0.0
    %159 = vmatpush1.msra.mxu0 0.0
    %160 = vmatprep.subr.mxu0 0.0
    %161 = vmatpush1.msra.mxu0 0.0
    %162 = vmatprep.subr.mxu0 0.0
    %163 = vmatpush1.msra.mxu0 0.0
    %164 = vmatprep.subr.mxu0 0.0
    %165 = vmatpush1.msra.mxu0 0.0
    %166 = vmatprep.subr.mxu0 0.0
    %167 = vmatpush1.msra.mxu0 0.0
    %168 = vmatprep.subr.mxu0 0.0
    %169 = vmatpush1.msra.mxu0 0.0
    %170 = vmatprep.subr.mxu0 0.0
    %171 = vmatpush1.msra.mxu0 0.0
    %172 = vmatprep.subr.mxu0 0.0
    %173 = vmatpush1.msra.mxu0 0.0
    %174 = vmatprep.subr.mxu0 0.0
    %175 = vmatpush1.msra.mxu0 0.0
    %176 = vmatprep.subr.mxu0 0.0
    %177 = vmatpush1.msra.mxu0 0.0
    %178 = vmatprep.subr.mxu0 0.0
    %179 = vmatpush1.msra.mxu0 0.0
    %180 = vmatprep.subr.mxu0 0.0
    %181 = vmatpush1.msra.mxu0 0.0
    %182 = vmatprep.subr.mxu0 0.0
    %183 = vmatpush1.msra.mxu0 0.0
    %184 = vmatprep.subr.mxu0 0.0
    %185 = vmatpush1.msra.mxu0 0.0
    %186 = vmatprep.subr.mxu0 0.0
    %187 = vmatpush1.msra.mxu0 0.0
    %188 = vmatprep.subr.mxu0 0.0
    %189 = vmatpush1.msra.mxu0 0.0
    %190 = vmatprep.subr.mxu0 0.0
    %191 = vmatpush1.msra.mxu0 0.0
    %192 = vmatprep.subr.mxu0 0.0
    %193 = vmatpush1.msra.mxu0 0.0
    %194 = vmatprep.subr.mxu0 0.0
    %195 = vmatpush1.msra.mxu0 0.0
    %196 = vmatprep.subr.mxu0 0.0
    %197 = vmatpush1.msra.mxu0 0.0
    %198 = vmatprep.subr.mxu0 0.0
    %199 = vmatpush1.msra.mxu0 0.0
    %200 = vmatprep.mubr.f32.mxu0 0.0
    %201 = vmatmul.mubr.f32.gmra.mrb[0].mxu0 %v134
    %v202 = vpop.f32.mrb[0].mxu0
    %v203 = vadd.f32 %v130, %v202
    %v204 = vpop.f32.mrb[0].mxu0
    %205 = vdwg.mxu0
    %v206 = vmax.f32 %v203, 0.0
    %v207 = vld [vmem:[#allocation2] sm:$0xff]
    %v208 = vld [vmem:[#allocation9] sm:$0xff]
    %v209 = vld [vmem:[#allocation9 + $0x8] sm:$0xff]
    %v210 = vld [vmem:[#allocation9 + $0x10] sm:$0xff]
    %v211 = vld [vmem:[#allocation9 + $0x18] sm:$0xff]
    %v212 = vld [vmem:[#allocation11] sm:$0xff]
    %v213 = vld [vmem:[#allocation11 + $0x8] sm:$0xff]
    %v214 = vld [vmem:[#allocation11 + $0x10] sm:$0xff]
    %v215 = vld [vmem:[#allocation11 + $0x18] sm:$0xff]
    %v216 = vld [vmem:[#allocation11 + $0x20] sm:$0xff]
    %v217 = vld [vmem:[#allocation11 + $0x28] sm:$0xff]
    %v218 = vld [vmem:[#allocation11 + $0x30] sm:$0xff]
    %v219 = vld [vmem:[#allocation11 + $0x38] sm:$0xff]
    %v220 = vld [vmem:[#allocation11 + $0x40] sm:$0xff]
    %v221 = vld [vmem:[#allocation11 + $0x48] sm:$0xff]
    %v222 = vld [vmem:[#allocation11 + $0x50] sm:$0xff]
    %v223 = vld [vmem:[#allocation11 + $0x58] sm:$0xff]
    %v224 = vld [vmem:[#allocation11 + $0x60] sm:$0xff]
    %v225 = vld [vmem:[#allocation11 + $0x68] sm:$0xff]
    %v226 = vld [vmem:[#allocation11 + $0x70] sm:$0xff]
    %v227 = vld [vmem:[#allocation11 + $0x78] sm:$0xff]
    %228 = vmatprep.subr.mxu0 0.0
    %229 = vmatpush1.msra.mxu0 %v212
    %230 = vmatprep.subr.mxu0 0.0
    %231 = vmatpush1.msra.mxu0 %v213
    %232 = vmatprep.subr.mxu0 0.0
    %233 = vmatpush1.msra.mxu0 %v214
    %234 = vmatprep.subr.mxu0 0.0
    %235 = vmatpush1.msra.mxu0 %v215
    %236 = vmatprep.subr.mxu0 0.0
    %237 = vmatpush1.msra.mxu0 %v216
    %238 = vmatprep.subr.mxu0 0.0
    %239 = vmatpush1.msra.mxu0 %v217
    %240 = vmatprep.subr.mxu0 0.0
    %241 = vmatpush1.msra.mxu0 %v218
    %242 = vmatprep.subr.mxu0 0.0
    %243 = vmatpush1.msra.mxu0 %v219
    %244 = vmatprep.subr.mxu0 0.0
    %245 = vmatpush1.msra.mxu0 %v220
    %246 = vmatprep.subr.mxu0 0.0
    %247 = vmatpush1.msra.mxu0 %v221
    %248 = vmatprep.subr.mxu0 0.0
    %249 = vmatpush1.msra.mxu0 %v222
    %250 = vmatprep.subr.mxu0 0.0
    %251 = vmatpush1.msra.mxu0 %v223
    %252 = vmatprep.subr.mxu0 0.0
    %253 = vmatpush1.msra.mxu0 %v224
    %254 = vmatprep.subr.mxu0 0.0
    %255 = vmatpush1.msra.mxu0 %v225
    %256 = vmatprep.subr.mxu0 0.0
    %257 = vmatpush1.msra.mxu0 %v226
    %258 = vmatprep.subr.mxu0 0.0
    %259 = vmatpush1.msra.mxu0 %v227
    %260 = vmatprep.subr.mxu0 0.0
    %261 = vmatpush1.msra.mxu0 0.0
    %262 = vmatprep.subr.mxu0 0.0
    %263 = vmatpush1.msra.mxu0 0.0
    %264 = vmatprep.subr.mxu0 0.0
    %265 = vmatpush1.msra.mxu0 0.0
    %266 = vmatprep.subr.mxu0 0.0
    %267 = vmatpush1.msra.mxu0 0.0
    %268 = vmatprep.subr.mxu0 0.0
    %269 = vmatpush1.msra.mxu0 0.0
    %270 = vmatprep.subr.mxu0 0.0
    %271 = vmatpush1.msra.mxu0 0.0
    %272 = vmatprep.subr.mxu0 0.0
    %273 = vmatpush1.msra.mxu0 0.0
    %274 = vmatprep.subr.mxu0 0.0
    %275 = vmatpush1.msra.mxu0 0.0
    %276 = vmatprep.subr.mxu0 0.0
    %277 = vmatpush1.msra.mxu0 0.0
    %278 = vmatprep.subr.mxu0 0.0
    %279 = vmatpush1.msra.mxu0 0.0
    %280 = vmatprep.subr.mxu0 0.0
    %281 = vmatpush1.msra.mxu0 0.0
    %282 = vmatprep.subr.mxu0 0.0
    %283 = vmatpush1.msra.mxu0 0.0
    %284 = vmatprep.subr.mxu0 0.0
    %285 = vmatpush1.msra.mxu0 0.0
    %286 = vmatprep.subr.mxu0 0.0
    %287 = vmatpush1.msra.mxu0 0.0
    %288 = vmatprep.subr.mxu0 0.0
    %289 = vmatpush1.msra.mxu0 0.0
    %290 = vmatprep.subr.mxu0 0.0
    %291 = vmatpush1.msra.mxu0 0.0
    %292 = vmatprep.mubr.f32.mxu0 0.0
    %293 = vmatmul.mubr.f32.gmra.mrb[0].mxu0 %v207
    %v294 = vpop.f32.mrb[0].mxu0
    %v295 = vadd.f32 0.0, %v294
    %v296 = vpop.f32.mrb[0].mxu0
    %297 = vdwg.mxu0
    %v299 = vsel %vm132, %v206, 0
    %301 = vmatprep.subr.mxu0 0.0
    %302 = vmatpush1.msra.mxu0 %v208
    %303 = vmatprep.subr.mxu0 0.0
    %304 = vmatpush1.msra.mxu0 %v209
    %305 = vmatprep.subr.mxu0 0.0
    %306 = vmatpush1.msra.mxu0 %v210
    %307 = vmatprep.subr.mxu0 0.0
    %308 = vmatpush1.msra.mxu0 %v211
    %309 = vmatprep.subr.mxu0 0.0
    %310 = vmatpush1.msra.mxu0 0.0
    %311 = vmatprep.subr.mxu0 0.0
    %312 = vmatpush1.msra.mxu0 0.0
    %313 = vmatprep.subr.mxu0 0.0
    %314 = vmatpush1.msra.mxu0 0.0
    %315 = vmatprep.subr.mxu0 0.0
    %316 = vmatpush1.msra.mxu0 0.0
    %317 = vmatprep.subr.mxu0 0.0
    %318 = vmatpush1.msra.mxu0 0.0
    %319 = vmatprep.subr.mxu0 0.0
    %320 = vmatpush1.msra.mxu0 0.0
    %321 = vmatprep.subr.mxu0 0.0
    %322 = vmatpush1.msra.mxu0 0.0
    %323 = vmatprep.subr.mxu0 0.0
    %324 = vmatpush1.msra.mxu0 0.0
    %325 = vmatprep.subr.mxu0 0.0
    %326 = vmatpush1.msra.mxu0 0.0
    %327 = vmatprep.subr.mxu0 0.0
    %328 = vmatpush1.msra.mxu0 0.0
    %329 = vmatprep.subr.mxu0 0.0
    %330 = vmatpush1.msra.mxu0 0.0
    %331 = vmatprep.subr.mxu0 0.0
    %332 = vmatpush1.msra.mxu0 0.0
    %333 = vmatprep.subr.mxu0 0.0
    %334 = vmatpush1.msra.mxu0 0.0
    %335 = vmatprep.subr.mxu0 0.0
    %336 = vmatpush1.msra.mxu0 0.0
    %337 = vmatprep.subr.mxu0 0.0
    %338 = vmatpush1.msra.mxu0 0.0
    %339 = vmatprep.subr.mxu0 0.0
    %340 = vmatpush1.msra.mxu0 0.0
    %341 = vmatprep.subr.mxu0 0.0
    %342 = vmatpush1.msra.mxu0 0.0
    %343 = vmatprep.subr.mxu0 0.0
    %344 = vmatpush1.msra.mxu0 0.0
    %345 = vmatprep.subr.mxu0 0.0
    %346 = vmatpush1.msra.mxu0 0.0
    %347 = vmatprep.subr.mxu0 0.0
    %348 = vmatpush1.msra.mxu0 0.0
    %349 = vmatprep.subr.mxu0 0.0
    %350 = vmatpush1.msra.mxu0 0.0
    %351 = vmatprep.subr.mxu0 0.0
    %352 = vmatpush1.msra.mxu0 0.0
    %353 = vmatprep.subr.mxu0 0.0
    %354 = vmatpush1.msra.mxu0 0.0
    %355 = vmatprep.subr.mxu0 0.0
    %356 = vmatpush1.msra.mxu0 0.0
    %357 = vmatprep.subr.mxu0 0.0
    %358 = vmatpush1.msra.mxu0 0.0
    %359 = vmatprep.subr.mxu0 0.0
    %360 = vmatpush1.msra.mxu0 0.0
    %361 = vmatprep.subr.mxu0 0.0
    %362 = vmatpush1.msra.mxu0 0.0
    %363 = vmatprep.subr.mxu0 0.0
    %364 = vmatpush1.msra.mxu0 0.0
    %365 = vmatprep.mubr.f32.mxu0 0.0
    %366 = vmatmul.mubr.f32.gmra.mrb[0].mxu0 %v299
    %v367 = vpop.f32.mrb[0].mxu0
    %v368 = vadd.f32 %v295, %v367
    %v369 = vpop.f32.mrb[0].mxu0
    %370 = vdwg.mxu0
    %v371 = vld [vmem:[%s6] sm:$0x1]
    %v373 = vlaneseq
    %v374 = vshrl.u32 %v373, 7
    %v375 = vsub.s32 0, %v374
    %v376 = vrot.slane %v371, %v375
    %v378 = vadd.f32 %v368, %v376
    %v379 = vxor.u32 %v378, 2147483648
    %v380 = vmul.f32 %v379, 1.442695
    %v381 = vpow.pop %v380
    %v382 = vadd.f32 %v381, 1.0
    %v383 = vrcp.pop %v382
    %v384 = vmul.f32 1.0, %v383
    %386 = vrot.lane.b32.xlu0 %v378, 32
    %v387 = vpop.permute.xlu0 %386
    %v389 = vmul.f32 %v384, %v387
    %391 = vrot.lane.b32.xlu0 %v389, 64
    %v392 = vpop.permute.xlu0 %391
    %v394 = vadd.f32 %v378, %v392
    %v395 = vtanh.pop %v394
    %v396 = vsub.f32 1.0, %v384
    %398 = vrot.lane.b32.xlu0 %v395, 96
    %v399 = vpop.permute.xlu0 %398
    %v401 = vmul.f32 %v396, %v399
    %403 = vrot.lane.b32.xlu0 %v207, 32
    %v404 = vpop.permute.xlu0 %403
    %v406 = vmul.f32 %v384, %v404
    %v407 = vadd.f32 %v401, %v406
    %v408 = vld [vmem:[#allocation12] sm:$0xff]
    %v409 = vld [vmem:[#allocation12 + $0x8] sm:$0xff]
    %v410 = vld [vmem:[#allocation12 + $0x10] sm:$0xff]
    %v411 = vld [vmem:[#allocation12 + $0x18] sm:$0xff]
    %v412 = vld [vmem:[%s8] sm:$0x1]
    %v414 = vlaneseq
    %v415 = vshrl.u32 %v414, 7
    %v416 = vsub.s32 0, %v415
    %v417 = vrot.slane %v412, %v416
    %420 = vrot.lane.b32.xlu0 %v407, 96
    %v421 = vpop.permute.xlu0 %420
    %v422 = vsel %vm132, %v421, 0
    %424 = vmatprep.subr.mxu0 0.0
    %425 = vmatpush1.msra.mxu0 %v408
    %426 = vmatprep.subr.mxu0 0.0
    %427 = vmatpush1.msra.mxu0 %v409
    %428 = vmatprep.subr.mxu0 0.0
    %429 = vmatpush1.msra.mxu0 %v410
    %430 = vmatprep.subr.mxu0 0.0
    %431 = vmatpush1.msra.mxu0 %v411
    %432 = vmatprep.subr.mxu0 0.0
    %433 = vmatpush1.msra.mxu0 0.0
    %434 = vmatprep.subr.mxu0 0.0
    %435 = vmatpush1.msra.mxu0 0.0
    %436 = vmatprep.subr.mxu0 0.0
    %437 = vmatpush1.msra.mxu0 0.0
    %438 = vmatprep.subr.mxu0 0.0
    %439 = vmatpush1.msra.mxu0 0.0
    %440 = vmatprep.subr.mxu0 0.0
    %441 = vmatpush1.msra.mxu0 0.0
    %442 = vmatprep.subr.mxu0 0.0
    %443 = vmatpush1.msra.mxu0 0.0
    %444 = vmatprep.subr.mxu0 0.0
    %445 = vmatpush1.msra.mxu0 0.0
    %446 = vmatprep.subr.mxu0 0.0
    %447 = vmatpush1.msra.mxu0 0.0
    %448 = vmatprep.subr.mxu0 0.0
    %449 = vmatpush1.msra.mxu0 0.0
    %450 = vmatprep.subr.mxu0 0.0
    %451 = vmatpush1.msra.mxu0 0.0
    %452 = vmatprep.subr.mxu0 0.0
    %453 = vmatpush1.msra.mxu0 0.0
    %454 = vmatprep.subr.mxu0 0.0
    %455 = vmatpush1.msra.mxu0 0.0
    %456 = vmatprep.subr.mxu0 0.0
    %457 = vmatpush1.msra.mxu0 0.0
    %458 = vmatprep.subr.mxu0 0.0
    %459 = vmatpush1.msra.mxu0 0.0
    %460 = vmatprep.subr.mxu0 0.0
    %461 = vmatpush1.msra.mxu0 0.0
    %462 = vmatprep.subr.mxu0 0.0
    %463 = vmatpush1.msra.mxu0 0.0
    %464 = vmatprep.subr.mxu0 0.0
    %465 = vmatpush1.msra.mxu0 0.0
    %466 = vmatprep.subr.mxu0 0.0
    %467 = vmatpush1.msra.mxu0 0.0
    %468 = vmatprep.subr.mxu0 0.0
    %469 = vmatpush1.msra.mxu0 0.0
    %470 = vmatprep.subr.mxu0 0.0
    %471 = vmatpush1.msra.mxu0 0.0
    %472 = vmatprep.subr.mxu0 0.0
    %473 = vmatpush1.msra.mxu0 0.0
    %474 = vmatprep.subr.mxu0 0.0
    %475 = vmatpush1.msra.mxu0 0.0
    %476 = vmatprep.subr.mxu0 0.0
    %477 = vmatpush1.msra.mxu0 0.0
    %478 = vmatprep.subr.mxu0 0.0
    %479 = vmatpush1.msra.mxu0 0.0
    %480 = vmatprep.subr.mxu0 0.0
    %481 = vmatpush1.msra.mxu0 0.0
    %482 = vmatprep.subr.mxu0 0.0
    %483 = vmatpush1.msra.mxu0 0.0
    %484 = vmatprep.subr.mxu0 0.0
    %485 = vmatpush1.msra.mxu0 0.0
    %486 = vmatprep.subr.mxu0 0.0
    %487 = vmatpush1.msra.mxu0 0.0
    %488 = vmatprep.mubr.f32.mxu0 0.0
    %489 = vmatmul.mubr.f32.gmra.mrb[0].mxu0 %v422
    %v490 = vpop.f32.mrb[0].mxu0
    %v491 = vadd.f32 %v417, %v490
    %v492 = vpop.f32.mrb[0].mxu0
    %493 = vdwg.mxu0
    %494 = vst [vmem:[#allocation14] sm:$0xff] %v491
    %496 = vst.msk [vmem:[#allocation2] sm:$0xff] %vm132, %v421
    // Predicated region
    $region66: #{tpu_custom_call.1} parent=1 // pred_check
      %p497 = pneg %p114
    $region67: #{tpu_custom_call.1} parent=1 // pred_check_branch
      %499 = sbr.rel (%p497) target = $region69
    $region68: #{tpu_custom_call.1} parent=1 // pred_region
      %v500 = vld [vmem:[#allocation2] sm:$0xff]
      %501 = vst [vmem:[#allocation15] sm:$0xff] %v500
    $region69: #{tpu_custom_call.1} parent=1 // pred_fallthru
      _
    // Predicated region
    $region70: #{tpu_custom_call.1} parent=1 // pred_check
      _
    $region71: #{tpu_custom_call.1} parent=1 // pred_check_branch
      %503 = sbr.rel (0) target = $region73
    $region72: #{tpu_custom_call.1} parent=1 // pred_region
      %s505 = ssub.s32 128, 128
      %506 = vsyncadd [#allocation5], %s505
      %s508 = sshll.u32 [#allocation14], 4
      %s509 = int_to_ptr.vmem [resolvable:$true] %s508
      %511 = dma.vmem_to_hbm [thread:$0]  %s509, 128, %s9, [#allocation5]
    $region73: #{tpu_custom_call.1} parent=1 // pred_fallthru
      _
    // Predicated region
    $region74: #{tpu_custom_call.1} parent=1 // pred_check
      _
    $region75: #{tpu_custom_call.1} parent=1 // pred_check_branch
      %513 = sbr.rel (0) target = $region77
    $region76: #{tpu_custom_call.1} parent=1 // pred_region
      %s515 = ssub.s32 128, 128
      %516 = vsyncadd [#allocation16], %s515
      %s518 = sshll.u32 [#allocation15], 4
      %s519 = int_to_ptr.vmem [resolvable:$true] %s518
      %521 = dma.vmem_to_hbm [thread:$0]  %s519, 128, %s10, [#allocation16]
    $region77: #{tpu_custom_call.1} parent=1 // pred_fallthru
      _
    // Predicated region
    $region78: #{tpu_custom_call.1} parent=1 // pred_check
      _
    $region79: #{tpu_custom_call.1} parent=1 // pred_check_branch
      %523 = sbr.rel (0) target = $region81
    $region80: #{tpu_custom_call.1} parent=1 // pred_region
      %524 = dma.done [#allocation5], 128
    $region81: #{tpu_custom_call.1} parent=1 // pred_fallthru
      _
    // Predicated region
    $region82: #{tpu_custom_call.1} parent=1 // pred_check
      _
    $region83: #{tpu_custom_call.1} parent=1 // pred_check_branch
      %526 = sbr.rel (0) target = $region85
    $region84: #{tpu_custom_call.1} parent=1 // pred_region
      %527 = dma.done [#allocation16], 128
    $region85: #{tpu_custom_call.1} parent=1 // pred_fallthru
      _
    %528 = vsyncpa [#allocation4], 1
    %529 = vsyncpa [#allocation7], 1
    %530 = vsyncpa [#allocation10], 1
    %531 = vsyncpa [#allocation13], 1
    %532 = vsyncpa [#allocation5], 1
    %533 = vsyncpa [#allocation16], 1

</llo_original>
